<compile_context>
chip_gen: v7x
topology: tpu7x:2x2x1
jax: 0.10.0
libtpu: 0.0.40
codegen_flags: <defaults>
</compile_context>

<pallas_src>
import numpy as np
import jax
import jax.numpy as jnp
from jax.experimental import pallas as pl
from jax.experimental.pallas import tpu as pltpu


# ----------------------------- Pallas kernels ------------------------------ #

def conv_bias_kernel(p_ref, w_ref, b_ref, o_ref):
    """out = W @ patches + bias   (3x3 conv as im2col matmul, BN folded).

    p_ref : (9*Cin, Tp)   bf16   im2col patches, lane axis = (batch, spatial)
    w_ref : (Cout, 9*Cin) bf16   BN-scale-folded weights
    b_ref : (Cout, 1)     f32    BN bias
    o_ref : (Cout, Tp)    f32
    (Also reused for the fused dual-conv call, where a leading "which conv"
    grid axis is squeezed away so the refs are still 2-D.)
    """
    acc = jnp.dot(w_ref[...], p_ref[...], preferred_element_type=jnp.float32)
    o_ref[...] = (acc + b_ref[...]).astype(o_ref.dtype)


def conv_gate_kernel(p_ref, w_ref, b_ref, y_ref, up_ref, o_ref):
    """Fused SCConv gate: out = (W3 @ patches + b3) * sigmoid(y + up).

    p_ref : (9*Cin, Tp)  bf16   im2col patches of y (for the k3 conv)
    w_ref : (Cin, 9*Cin) bf16   k3 weights (BN scale folded)
    b_ref : (Cin, 1)     f32    k3 BN bias
    y_ref : (Cin, Tp)    f32    identity (flattened, lane-dense)
    up_ref: (Cin, Tp)    f32    nearest-upsampled k2(y)
    o_ref : (Cin, Tp)    f32
    """
    k3y = jnp.dot(w_ref[...], p_ref[...],
                  preferred_element_type=jnp.float32) + b_ref[...]
    o_ref[...] = (k3y * jax.nn.sigmoid(y_ref[...] + up_ref[...])).astype(o_ref.dtype)


# ------------------------------ layout glue --------------------------------- #

def _im2col(x_nchw, stride):
    """3x3, pad=1 im2col.  Returns (9*C, N*Ho*Wo) patches (f32) + (N, Ho, Wo)."""
    N, C, H, W = x_nchw.shape
    Ho = (H + 2 - 3) // stride + 1
    Wo = (W + 2 - 3) // stride + 1
    xp = jnp.pad(x_nchw, ((0, 0), (0, 0), (1, 1), (1, 1)))
    taps = []
    for kh in range(3):
        for kw in range(3):
            t = xp[:, :,
                   kh:kh + stride * (Ho - 1) + 1:stride,
                   kw:kw + stride * (Wo - 1) + 1:stride]        # (N, C, Ho, Wo)
            taps.append(t)
    p = jnp.stack(taps, axis=0)                                 # (9, N, C, Ho, Wo)
    p = p.transpose(0, 2, 1, 3, 4).reshape(9 * C, N * Ho * Wo)  # (9*C, P)
    return p, (N, Ho, Wo)


def _to_cn(x_nchw):
    """(N, C, H, W) -> (C, N*H*W), matching im2col column order."""
    N, C, H, W = x_nchw.shape
    return x_nchw.transpose(1, 0, 2, 3).reshape(C, N * H * W)


def _from_cn(x_cf, N, H, W):
    """(C, N*H*W) -> (N, C, H, W)."""
    C = x_cf.shape[0]
    return x_cf.reshape(C, N, H, W).transpose(1, 0, 2, 3)


def _choose_tile(P):
    """Lane-dense spatial tile: multiple of 128, >=2 grid steps when possible."""
    if P <= 512:
        if P % 256 == 0 and P // 256 >= 2:
            return 256          # 2 parallel steps -> both v7x TensorCores busy
        return P
    for t in (1024, 512, 256, 128):
        if P % t == 0:
            return t
    return P


def avg_pool_3x3(x_nchw):
    """AvgPool2d(kernel_size=3, stride=3), floor mode (PyTorch default) — glue."""
    N, C, H, W = x_nchw.shape
    Ho, Wo = H // 3, W // 3
    xc = x_nchw[:, :, :Ho * 3, :Wo * 3]
    return xc.reshape(N, C, Ho, 3, Wo, 3).mean(axis=(3, 5))


def nearest_upsample(x_nchw, size):
    """F.interpolate(mode='nearest'): src = floor(dst * in / out) — glue gather."""
    N, C, h, w = x_nchw.shape
    H, W = size
    hi = (jnp.arange(H) * h) // H
    wi = (jnp.arange(W) * w) // W
    return x_nchw[:, :, hi][:, :, :, wi]


# ------------------------------ conv wrappers ------------------------------- #

def conv3x3_bn(x_nchw, w9, scale, bias, stride=1):
    """3x3 conv (pad=1, no conv bias) + eval-mode BN, as one im2col matmul."""
    _, Cin, _, _ = x_nchw.shape
    Cout = w9.shape[-1]
    K = 9 * Cin

    patches, (N, Ho, Wo) = _im2col(x_nchw, stride)              # (K, P) f32
    P = patches.shape[1]
    wmat = (w9 * scale[None, None, :]).reshape(K, Cout).T       # BN scale folded
    bvec = bias.reshape(Cout, 1).astype(jnp.float32)

    Tp = _choose_tile(P)
    out_flat = pl.pallas_call(
        conv_bias_kernel,
        out_shape=jax.ShapeDtypeStruct((Cout, P), jnp.float32),
        grid=(P // Tp,),
        in_specs=[
            pl.BlockSpec((K, Tp), lambda i: (0, i)),
            pl.BlockSpec((Cout, K), lambda i: (0, 0)),
            pl.BlockSpec((Cout, 1), lambda i: (0, 0)),
        ],
        out_specs=pl.BlockSpec((Cout, Tp), lambda i: (0, i)),
        compiler_params=pltpu.CompilerParams(
            dimension_semantics=("parallel",)),
        cost_estimate=pl.CostEstimate(
            flops=2 * Cout * K * P,
            transcendentals=0,
            bytes_accessed=(K * P + Cout * K) * 2 + Cout * P * 4 + Cout * 4),
    )(patches.astype(jnp.bfloat16), wmat.astype(jnp.bfloat16), bvec)

    return _from_cn(out_flat, N, Ho, Wo)                        # (N, Cout, Ho, Wo)


def conv3x3_bn_gate(y_nchw, up_nchw, w9, scale, bias):
    """Fused: k3(y) * sigmoid(y + up), where k3 is conv3x3+BN (stride 1)."""
    _, Cin, H, W = y_nchw.shape
    K = 9 * Cin

    patches, (N, Ho, Wo) = _im2col(y_nchw, 1)                   # (K, P) f32
    P = patches.shape[1]
    wmat = (w9 * scale[None, None, :]).reshape(K, Cin).T
    bvec = bias.reshape(Cin, 1).astype(jnp.float32)
    y_flat = _to_cn(y_nchw)
    up_flat = _to_cn(up_nchw)

    Tp = _choose_tile(P)
    out_flat = pl.pallas_call(
        conv_gate_kernel,
        out_shape=jax.ShapeDtypeStruct((Cin, P), jnp.float32),
        grid=(P // Tp,),
        in_specs=[
            pl.BlockSpec((K, Tp), lambda i: (0, i)),
            pl.BlockSpec((Cin, K), lambda i: (0, 0)),
            pl.BlockSpec((Cin, 1), lambda i: (0, 0)),
            pl.BlockSpec((Cin, Tp), lambda i: (0, i)),
            pl.BlockSpec((Cin, Tp), lambda i: (0, i)),
        ],
        out_specs=pl.BlockSpec((Cin, Tp), lambda i: (0, i)),
        compiler_params=pltpu.CompilerParams(
            dimension_semantics=("parallel",)),
        cost_estimate=pl.CostEstimate(
            flops=2 * Cin * K * P + 3 * Cin * P,
            transcendentals=Cin * P,
            bytes_accessed=(K * P + Cin * K) * 2 + 3 * Cin * P * 4 + Cin * 4),
    )(patches.astype(jnp.bfloat16), wmat.astype(jnp.bfloat16), bvec,
      y_flat, up_flat)

    return _from_cn(out_flat, N, Ho, Wo)                        # (N, Cin, H, W)


def dual_conv3x3_bn_cat(xa, xb, w9a, sa, ba, w9b, sb, bb, stride):
    """Two same-shape 3x3 conv+BN (k4 on `xa`, k1 on `xb`) fused into one
    pallas_call; the two channel groups are written to disjoint sublane blocks
    of a single output, which is exactly the final torch.cat(dim=1)."""
    _, Cin, _, _ = xa.shape
    Cout = w9a.shape[-1]
    K = 9 * Cin

    pa, (N, Ho, Wo) = _im2col(xa, stride)                       # (K, P) f32
    pb, _ = _im2col(xb, stride)
    P = pa.shape[1]
    patches = jnp.stack([pa, pb], axis=0).astype(jnp.bfloat16)  # (2, K, P)
    wa = (w9a * sa[None, None, :]).reshape(K, Cout).T
    wb = (w9b * sb[None, None, :]).reshape(K, Cout).T
    wmat = jnp.stack([wa, wb], axis=0).astype(jnp.bfloat16)     # (2, Cout, K)
    bvec = jnp.stack([ba.reshape(Cout, 1), bb.reshape(Cout, 1)],
                     axis=0).astype(jnp.float32)                # (2, Cout, 1)

    Tp = _choose_tile(P)
    out_flat = pl.pallas_call(
        conv_bias_kernel,
        out_shape=jax.ShapeDtypeStruct((2 * Cout, P), jnp.float32),
        grid=(2, P // Tp),
        in_specs=[
            pl.BlockSpec((None, K, Tp), lambda g, i: (g, 0, i)),
            pl.BlockSpec((None, Cout, K), lambda g, i: (g, 0, 0)),
            pl.BlockSpec((None, Cout, 1), lambda g, i: (g, 0, 0)),
        ],
        out_specs=pl.BlockSpec((Cout, Tp), lambda g, i: (g, i)),
        compiler_params=pltpu.CompilerParams(
            dimension_semantics=("parallel", "parallel")),
        cost_estimate=pl.CostEstimate(
            flops=2 * 2 * Cout * K * P,
            transcendentals=0,
            bytes_accessed=2 * ((K * P + Cout * K) * 2 + Cout * P * 4 + Cout * 4)),
    )(patches, wmat, bvec)

    return _from_cn(out_flat, N, Ho, Wo)                        # (N, 2*Cout, Ho, Wo)


# ------------------------------- full module -------------------------------- #

def downsample_attention(x_nchw, p, stride):
    """Downsample_Attention forward (NCHW in / NCHW out)."""
    C = x_nchw.shape[1]
    Ch = C // 2
    y, z = x_nchw[:, :Ch], x_nchw[:, Ch:]                       # torch.chunk(dim=1)
    H, W = y.shape[2], y.shape[3]

    # ---- Block1 (SCConvBlock1) ----
    pooled = avg_pool_3x3(y)                                                    # k2 pool
    k2y = conv3x3_bn(pooled, p["k2_w"], p["k2_s"], p["k2_b"], stride=1)         # k2 conv+BN
    up = nearest_upsample(k2y, (H, W))                                          # interpolate
    gated = conv3x3_bn_gate(y, up, p["k3_w"], p["k3_s"], p["k3_b"])             # k3 * sigmoid(y+up)

    # ---- k4 (Block1 output conv) + k1 (Block2) fused, output already cat'ed --
    out = dual_conv3x3_bn_cat(gated, z,
                              p["k4_w"], p["k4_s"], p["k4_b"],
                              p["k1_w"], p["k1_s"], p["k1_b"], stride)
    return out


# --------------------------- parameter init --------------------------------- #

def _bn_fold(c):
    """Deterministic eval-mode BatchNorm folded to (scale, bias)."""
    gamma = 1.0 + 0.1 * jnp.arange(c, dtype=jnp.float32) / max(c, 1)
    beta = 0.05 * jnp.arange(c, dtype=jnp.float32)
    mean = 0.02 * (jnp.arange(c, dtype=jnp.float32) - c / 2.0)
    var = 1.0 + 0.03 * jnp.arange(c, dtype=jnp.float32)
    eps = 1e-5
    scale = gamma / jnp.sqrt(var + eps)
    bias = beta - mean * scale
    return scale, bias


def init_params(key, in_half, out_ch):
    k1, k2, k3, k4 = jax.random.split(key, 4)
    p = {}
    p["k2_w"] = 0.1 * jax.random.normal(k1, (9, in_half, in_half), jnp.float32)
    p["k2_s"], p["k2_b"] = _bn_fold(in_half)
    p["k3_w"] = 0.1 * jax.random.normal(k2, (9, in_half, in_half), jnp.float32)
    p["k3_s"], p["k3_b"] = _bn_fold(in_half)
    p["k4_w"] = 0.1 * jax.random.normal(k3, (9, in_half, out_ch), jnp.float32)
    p["k4_s"], p["k4_b"] = _bn_fold(out_ch)
    p["k1_w"] = 0.1 * jax.random.normal(k4, (9, in_half, out_ch), jnp.float32)
    p["k1_s"], p["k1_b"] = _bn_fold(out_ch)
    return p


# ------------------------- pure-JAX reference ------------------------------- #
# Mirrors the kernel's bf16 rounding points so tolerances stay tight.

def _bf16_f32(x):
    return x.astype(jnp.bfloat16).astype(jnp.float32)


def _ref_conv_bn(x_nchw, w9, scale, bias, stride):
    Cin, Cout = w9.shape[1], w9.shape[2]
    wf = _bf16_f32(w9 * scale[None, None, :]).reshape(3, 3, Cin, Cout)  # HWIO
    y = jax.lax.conv_general_dilated(
        _bf16_f32(x_nchw), wf, window_strides=(stride, stride),
        padding=((1, 1), (1, 1)),
        dimension_numbers=("NCHW", "HWIO", "NCHW"))
    return y + bias[None, :, None, None]


def _ref_forward(x_nchw, p, stride):
    C = x_nchw.shape[1]
    Ch = C // 2
    y, z = x_nchw[:, :Ch], x_nchw[:, Ch:]
    H, W = y.shape[2], y.shape[3]
    pooled = avg_pool_3x3(y)
    k2 = _ref_conv_bn(pooled, p["k2_w"], p["k2_s"], p["k2_b"], 1)
    up = nearest_upsample(k2, (H, W))
    k3 = _ref_conv_bn(y, p["k3_w"], p["k3_s"], p["k3_b"], 1)
    g = k3 * jax.nn.sigmoid(y + up)
    o1 = _ref_conv_bn(g, p["k4_w"], p["k4_s"], p["k4_b"], stride)
    o2 = _ref_conv_bn(z, p["k1_w"], p["k1_s"], p["k1_b"], stride)
    return jnp.concatenate([o1, o2], axis=1)


# --------------------------------- main ------------------------------------- #

if __name__ == "__main__":
    key = jax.random.PRNGKey(0)
    kx, kp = jax.random.split(key)

    # Downsample_Attention(in_channels=4, out_channels=8, stride=2): forward
    # chunks the input into two 4-channel halves, so x has 8 channels (NCHW).
    in_half, out_ch, stride = 4, 8, 2
    N, H, W = 2, 16, 16
    x = jax.random.normal(kx, (N, 2 * in_half, H, W), jnp.float32)

    params = init_params(kp, in_half, out_ch)

    fwd = jax.jit(lambda xx: downsample_attention(xx, params, stride))
    out = jax.block_until_ready(fwd(x))

    ref = jax.block_until_ready(_ref_forward(x, params, stride))
    assert out.shape == (N, 2 * out_ch, H // stride, W // stride), out.shape
    np.testing.assert_allclose(np.asarray(out), np.asarray(ref),
                               atol=1e-2, rtol=1e-2)

    print("KERNEL_OK")
</pallas_src>

<mosaic_0001>
module attributes {stable_mosaic.version = 11 : i64} {
  func.func @conv_bias_kernel(%arg0: i32, %arg1: memref<36x50xbf16, #tpu.memory_space<vmem>>, %arg2: memref<4x36xbf16, #tpu.memory_space<vmem>>, %arg3: memref<4x1xf32, #tpu.memory_space<vmem>>, %arg4: memref<4x50xf32, #tpu.memory_space<vmem>>) attributes {dimension_semantics = [#tpu.dimension_semantics<parallel>], iteration_bounds = array<i64: 1>, scalar_prefetch = 0 : i64, scratch_operands = 0 : i64, tpu.core_type = #tpu.core_type<tc>, window_params = [{transform_indices = @transform_0, window_bounds = array<i64: 36, 50>}, {pipeline_mode = #tpu.pipeline_mode<synchronous>, transform_indices = @transform_1, window_bounds = array<i64: 4, 36>}, {pipeline_mode = #tpu.pipeline_mode<synchronous>, transform_indices = @transform_2, window_bounds = array<i64: 4, 1>}, {transform_indices = @transform_3, window_bounds = array<i64: 4, 50>}]} {
    %c0 = arith.constant 0 : index
    %c0_0 = arith.constant 0 : index
    %0 = vector.load %arg2[%c0, %c0_0] : memref<4x36xbf16, #tpu.memory_space<vmem>>, vector<4x36xbf16>
    %c0_1 = arith.constant 0 : index
    %c0_2 = arith.constant 0 : index
    %1 = vector.load %arg1[%c0_1, %c0_2] : memref<36x50xbf16, #tpu.memory_space<vmem>>, vector<36x50xbf16>
    %cst = arith.constant dense<0.000000e+00> : vector<4x50xf32>
    %2 = tpu.matmul %0, %1, %cst {dimension_numbers = #tpu.dot_dimension_numbers<[1], [0], [0], [1], [0, 0, 1, 1], [], []>} : vector<4x36xbf16>, vector<36x50xbf16>, vector<4x50xf32> -> vector<4x50xf32>
    %c0_3 = arith.constant 0 : index
    %c0_4 = arith.constant 0 : index
    %3 = vector.load %arg3[%c0_3, %c0_4] : memref<4x1xf32, #tpu.memory_space<vmem>>, vector<4x1xf32>
    %4 = vector.broadcast %3 : vector<4x1xf32> to vector<4x50xf32>
    %5 = arith.addf %2, %4 : vector<4x50xf32>
    %c0_5 = arith.constant 0 : index
    %c0_6 = arith.constant 0 : index
    %6 = vector.load %arg4[%c0_5, %c0_6] : memref<4x50xf32, #tpu.memory_space<vmem>>, vector<4x50xf32>
    tpu.vector_store %arg4[%c0_5, %c0_6], %5 {strides = array<i32>} : memref<4x50xf32, #tpu.memory_space<vmem>>, vector<4x50xf32>,
    return
  }
  func.func @transform_0(%arg0: i32) -> (i32, i32) {
    %c0_i32 = arith.constant 0 : i32
    %c0_i32_0 = arith.constant 0 : i32
    return %c0_i32, %arg0 : i32, i32
  }
  func.func @transform_1(%arg0: i32) -> (i32, i32) {
    %c0_i32 = arith.constant 0 : i32
    %c0_i32_0 = arith.constant 0 : i32
    %c0_i32_1 = arith.constant 0 : i32
    return %c0_i32, %c0_i32_0 : i32, i32
  }
  func.func @transform_2(%arg0: i32) -> (i32, i32) {
    %c0_i32 = arith.constant 0 : i32
    %c0_i32_0 = arith.constant 0 : i32
    %c0_i32_1 = arith.constant 0 : i32
    return %c0_i32, %c0_i32_0 : i32, i32
  }
  func.func @transform_3(%arg0: i32) -> (i32, i32) {
    %c0_i32 = arith.constant 0 : i32
    %c0_i32_0 = arith.constant 0 : i32
    return %c0_i32, %arg0 : i32, i32
  }
}

module attributes {stable_mosaic.version = 11 : i64} {
  func.func @conv_gate_kernel(%arg0: i32, %arg1: memref<36x256xbf16, #tpu.memory_space<vmem>>, %arg2: memref<4x36xbf16, #tpu.memory_space<vmem>>, %arg3: memref<4x1xf32, #tpu.memory_space<vmem>>, %arg4: memref<4x256xf32, #tpu.memory_space<vmem>>, %arg5: memref<4x256xf32, #tpu.memory_space<vmem>>, %arg6: memref<4x256xf32, #tpu.memory_space<vmem>>) attributes {dimension_semantics = [#tpu.dimension_semantics<parallel>], iteration_bounds = array<i64: 2>, scalar_prefetch = 0 : i64, scratch_operands = 0 : i64, tpu.core_type = #tpu.core_type<tc>, window_params = [{transform_indices = @transform_0, window_bounds = array<i64: 36, 256>}, {pipeline_mode = #tpu.pipeline_mode<synchronous>, transform_indices = @transform_1, window_bounds = array<i64: 4, 36>}, {pipeline_mode = #tpu.pipeline_mode<synchronous>, transform_indices = @transform_2, window_bounds = array<i64: 4, 1>}, {transform_indices = @transform_3, window_bounds = array<i64: 4, 256>}, {transform_indices = @transform_4, window_bounds = array<i64: 4, 256>}, {transform_indices = @transform_5, window_bounds = array<i64: 4, 256>}]} {
    %c0 = arith.constant 0 : index
    %c0_0 = arith.constant 0 : index
    %0 = vector.load %arg2[%c0, %c0_0] : memref<4x36xbf16, #tpu.memory_space<vmem>>, vector<4x36xbf16>
    %c0_1 = arith.constant 0 : index
    %c0_2 = arith.constant 0 : index
    %1 = vector.load %arg1[%c0_1, %c0_2] : memref<36x256xbf16, #tpu.memory_space<vmem>>, vector<36x256xbf16>
    %cst = arith.constant dense<0.000000e+00> : vector<4x256xf32>
    %2 = tpu.matmul %0, %1, %cst {dimension_numbers = #tpu.dot_dimension_numbers<[1], [0], [0], [1], [0, 0, 1, 1], [], []>} : vector<4x36xbf16>, vector<36x256xbf16>, vector<4x256xf32> -> vector<4x256xf32>
    %c0_3 = arith.constant 0 : index
    %c0_4 = arith.constant 0 : index
    %3 = vector.load %arg3[%c0_3, %c0_4] : memref<4x1xf32, #tpu.memory_space<vmem>>, vector<4x1xf32>
    %4 = vector.broadcast %3 : vector<4x1xf32> to vector<4x256xf32>
    %5 = arith.addf %2, %4 : vector<4x256xf32>
    %c0_5 = arith.constant 0 : index
    %c0_6 = arith.constant 0 : index
    %6 = vector.load %arg4[%c0_5, %c0_6] : memref<4x256xf32, #tpu.memory_space<vmem>>, vector<4x256xf32>
    %c0_7 = arith.constant 0 : index
    %c0_8 = arith.constant 0 : index
    %7 = vector.load %arg5[%c0_7, %c0_8] : memref<4x256xf32, #tpu.memory_space<vmem>>, vector<4x256xf32>
    %8 = arith.addf %6, %7 : vector<4x256xf32>
    %9 = arith.negf %8 : vector<4x256xf32>
    %10 = math.exp %9 : vector<4x256xf32>
    %cst_9 = arith.constant 1.000000e+00 : f32
    %11 = vector.broadcast %cst_9 : f32 to vector<4x256xf32>
    %12 = arith.addf %11, %10 : vector<4x256xf32>
    %13 = arith.divf %11, %12 : vector<4x256xf32>
    %14 = arith.mulf %5, %13 : vector<4x256xf32>
    %c0_10 = arith.constant 0 : index
    %c0_11 = arith.constant 0 : index
    %15 = vector.load %arg6[%c0_10, %c0_11] : memref<4x256xf32, #tpu.memory_space<vmem>>, vector<4x256xf32>
    tpu.vector_store %arg6[%c0_10, %c0_11], %14 {strides = array<i32>} : memref<4x256xf32, #tpu.memory_space<vmem>>, vector<4x256xf32>,
    return
  }
  func.func @transform_0(%arg0: i32) -> (i32, i32) {
    %c0_i32 = arith.constant 0 : i32
    %c0_i32_0 = arith.constant 0 : i32
    return %c0_i32, %arg0 : i32, i32
  }
  func.func @transform_1(%arg0: i32) -> (i32, i32) {
    %c0_i32 = arith.constant 0 : i32
    %c0_i32_0 = arith.constant 0 : i32
    %c0_i32_1 = arith.constant 0 : i32
    return %c0_i32, %c0_i32_0 : i32, i32
  }
  func.func @transform_2(%arg0: i32) -> (i32, i32) {
    %c0_i32 = arith.constant 0 : i32
    %c0_i32_0 = arith.constant 0 : i32
    %c0_i32_1 = arith.constant 0 : i32
    return %c0_i32, %c0_i32_0 : i32, i32
  }
  func.func @transform_3(%arg0: i32) -> (i32, i32) {
    %c0_i32 = arith.constant 0 : i32
    %c0_i32_0 = arith.constant 0 : i32
    return %c0_i32, %arg0 : i32, i32
  }
  func.func @transform_4(%arg0: i32) -> (i32, i32) {
    %c0_i32 = arith.constant 0 : i32
    %c0_i32_0 = arith.constant 0 : i32
    return %c0_i32, %arg0 : i32, i32
  }
  func.func @transform_5(%arg0: i32) -> (i32, i32) {
    %c0_i32 = arith.constant 0 : i32
    %c0_i32_0 = arith.constant 0 : i32
    return %c0_i32, %arg0 : i32, i32
  }
}

module attributes {stable_mosaic.version = 11 : i64} {
  func.func @conv_bias_kernel(%arg0: i32, %arg1: i32, %arg2: memref<1x36x128xbf16, #tpu.memory_space<vmem>>, %arg3: memref<1x8x36xbf16, #tpu.memory_space<vmem>>, %arg4: memref<1x8x1xf32, #tpu.memory_space<vmem>>, %arg5: memref<8x128xf32, #tpu.memory_space<vmem>>) attributes {dimension_semantics = [#tpu.dimension_semantics<parallel>, #tpu.dimension_semantics<parallel>], iteration_bounds = array<i64: 2, 1>, scalar_prefetch = 0 : i64, scratch_operands = 0 : i64, tpu.core_type = #tpu.core_type<tc>, window_params = [{transform_indices = @transform_0, window_bounds = array<i64: 1, 36, 128>}, {transform_indices = @transform_1, window_bounds = array<i64: 1, 8, 36>}, {transform_indices = @transform_2, window_bounds = array<i64: 1, 8, 1>}, {transform_indices = @transform_3, window_bounds = array<i64: 8, 128>}]} {
    %c0 = arith.constant 0 : index
    %c0_0 = arith.constant 0 : index
    %c0_1 = arith.constant 0 : index
    %0 = vector.load %arg3[%c0, %c0_0, %c0_1] : memref<1x8x36xbf16, #tpu.memory_space<vmem>>, vector<1x8x36xbf16>
    %1 = vector.shape_cast %0 : vector<1x8x36xbf16> to vector<8x36xbf16>
    %c0_2 = arith.constant 0 : index
    %c0_3 = arith.constant 0 : index
    %c0_4 = arith.constant 0 : index
    %2 = vector.load %arg2[%c0_2, %c0_3, %c0_4] : memref<1x36x128xbf16, #tpu.memory_space<vmem>>, vector<1x36x128xbf16>
    %3 = vector.shape_cast %2 : vector<1x36x128xbf16> to vector<36x128xbf16>
    %cst = arith.constant dense<0.000000e+00> : vector<8x128xf32>
    %4 = tpu.matmul %1, %3, %cst {dimension_numbers = #tpu.dot_dimension_numbers<[1], [0], [0], [1], [0, 0, 1, 1], [], []>} : vector<8x36xbf16>, vector<36x128xbf16>, vector<8x128xf32> -> vector<8x128xf32>
    %c0_5 = arith.constant 0 : index
    %c0_6 = arith.constant 0 : index
    %c0_7 = arith.constant 0 : index
    %5 = vector.load %arg4[%c0_5, %c0_6, %c0_7] : memref<1x8x1xf32, #tpu.memory_space<vmem>>, vector<1x8x1xf32>
    %6 = vector.shape_cast %5 : vector<1x8x1xf32> to vector<8x1xf32>
    %7 = vector.broadcast %6 : vector<8x1xf32> to vector<8x128xf32>
    %8 = arith.addf %4, %7 : vector<8x128xf32>
    %c0_8 = arith.constant 0 : index
    %c0_9 = arith.constant 0 : index
    %9 = vector.load %arg5[%c0_8, %c0_9] : memref<8x128xf32, #tpu.memory_space<vmem>>, vector<8x128xf32>
    tpu.vector_store %arg5[%c0_8, %c0_9], %8 {strides = array<i32>} : memref<8x128xf32, #tpu.memory_space<vmem>>, vector<8x128xf32>,
    return
  }
  func.func @transform_0(%arg0: i32, %arg1: i32) -> (i32, i32, i32) {
    %c0_i32 = arith.constant 0 : i32
    %c0_i32_0 = arith.constant 0 : i32
    return %arg0, %c0_i32, %arg1 : i32, i32, i32
  }
  func.func @transform_1(%arg0: i32, %arg1: i32) -> (i32, i32, i32) {
    %c0_i32 = arith.constant 0 : i32
    %c0_i32_0 = arith.constant 0 : i32
    %c0_i32_1 = arith.constant 0 : i32
    return %arg0, %c0_i32, %c0_i32_0 : i32, i32, i32
  }
  func.func @transform_2(%arg0: i32, %arg1: i32) -> (i32, i32, i32) {
    %c0_i32 = arith.constant 0 : i32
    %c0_i32_0 = arith.constant 0 : i32
    %c0_i32_1 = arith.constant 0 : i32
    return %arg0, %c0_i32, %c0_i32_0 : i32, i32, i32
  }
  func.func @transform_3(%arg0: i32, %arg1: i32) -> (i32, i32) {
    %c0_i32 = arith.constant 0 : i32
    return %arg0, %arg1 : i32, i32
  }
}

</mosaic_0001>

<llo_original>
// kernel: _lambda_.3
$region0: #{_lambda_.3}
  #allocation0 [shape = 'u32[]', space=smem, size = 0x4, offset = 0x4, fixed_abs, tag = 'smem constant byte address 0x4 - core index']
  #allocation1 [shape = 'u32[144,128]{1,0:T(1,128)}', space=vmem, size = 0x12000, scoped, tag = 'internal scratch']
  %s0 = inlined_call_operand.vmem [shape: bf16[36,50], index: 0, kind: input, shape index: {}]
  %s1 = inlined_call_operand.vmem [shape: bf16[4,36], index: 1, kind: input, shape index: {}]
  %s2 = inlined_call_operand.vmem [shape: f32[4,1], index: 2, kind: input, shape index: {}]
  %s3 = inlined_call_operand.vmem [shape: f32[4,50], index: 3, kind: output, shape index: {}]
  %s4 = sld [smem:[#allocation0]]
  $region22: #{_lambda_.3} parent=0
    _
  %s6 = ssub.s32 1, %s4
  %s7 = scalar_select 0, %s6, %s4
  // Predicated region
  $region2: #{_lambda_.3} parent=0 // pred_check
    _
  $region3: #{_lambda_.3} parent=0 // pred_check_branch
    %9 = sbr.rel (0) target = $region5
  $region4: #{_lambda_.3} parent=0 // pred_region
    _
  $region5: #{_lambda_.3} parent=0 // pred_fallthru
    _
  // Predicated region
  $region6: #{_lambda_.3} parent=0 // pred_check
    _
  $region7: #{_lambda_.3} parent=0 // pred_check_branch
    %11 = sbr.rel (0) target = $region9
  $region8: #{_lambda_.3} parent=0 // pred_region
    _
  $region9: #{_lambda_.3} parent=0 // pred_fallthru
    _
  // Predicated region
  $region10: #{_lambda_.3} parent=0 // pred_check
    _
  $region11: #{_lambda_.3} parent=0 // pred_check_branch
    %13 = sbr.rel (0) target = $region13
  $region12: #{_lambda_.3} parent=0 // pred_region
    _
  $region13: #{_lambda_.3} parent=0 // pred_fallthru
    _
  %v15 = vld [vmem:[%s1] sm:$0x3]
  %v16 = vld [vmem:[%s0] sm:$0xf]
  %v17 = vld [vmem:[%s0 + $0x4] sm:$0xf]
  %v18 = vld [vmem:[%s0 + $0x8] sm:$0xf]
  %v19 = vld [vmem:[%s0 + $0xc] sm:$0xf]
  %v20 = vld [vmem:[%s0 + $0x10] sm:$0x3]
  %v21 = vld [vmem:[%s2] sm:$0xf]
  %23 = vset.pattern.permute.xlu0 0
  %24 = vperm.xlu0 %23, %v21
  %v25 = vpop.permute.xlu0 %24
  %v32 = vunpack.c.l.b16 %v16
  %v33 = vunpack.c.l.b16 %v17
  %v34 = vunpack.c.l.b16 %v18
  %v35 = vunpack.c.l.b16 %v19
  %v36 = vunpack.c.l.b16 %v20
  %v37 = vpack.c.b16 %v33, %v32
  %v38 = vpack.c.b16 %v35, %v34
  %v39 = vpack.c.b16 %v36, %v36
  %vm42 = vcmask 293888
  %v44 = vsel %vm42, %v15, 0
  %vm46 = vcmask 1041408
  %v48 = vsel %vm46, %v39, 0
  %50 = vmatprep.subr.bf16.mxu0 0
  %51 = vmatpush1.bf16.msra.mxu0 %v37
  %52 = vmatprep.subr.bf16.mxu0 0
  %53 = vmatpush1.bf16.msra.mxu0 %v38
  %54 = vmatprep.subr.bf16.mxu0 0
  %55 = vmatpush1.bf16.msra.mxu0 %v48
  %56 = vmatprep.subr.bf16.mxu0 0
  %57 = vmatpush1.bf16.msra.mxu0 0
  %58 = vmatprep.subr.bf16.mxu0 0
  %59 = vmatpush1.bf16.msra.mxu0 0
  %60 = vmatprep.subr.bf16.mxu0 0
  %61 = vmatpush1.bf16.msra.mxu0 0
  %62 = vmatprep.subr.bf16.mxu0 0
  %63 = vmatpush1.bf16.msra.mxu0 0
  %64 = vmatprep.subr.bf16.mxu0 0
  %65 = vmatpush1.bf16.msra.mxu0 0
  %66 = vmatprep.subr.bf16.mxu0 0
  %67 = vmatpush1.bf16.msra.mxu0 0
  %68 = vmatprep.subr.bf16.mxu0 0
  %69 = vmatpush1.bf16.msra.mxu0 0
  %70 = vmatprep.subr.bf16.mxu0 0
  %71 = vmatpush1.bf16.msra.mxu0 0
  %72 = vmatprep.subr.bf16.mxu0 0
  %73 = vmatpush1.bf16.msra.mxu0 0
  %74 = vmatprep.subr.bf16.mxu0 0
  %75 = vmatpush1.bf16.msra.mxu0 0
  %76 = vmatprep.subr.bf16.mxu0 0
  %77 = vmatpush1.bf16.msra.mxu0 0
  %78 = vmatprep.subr.bf16.mxu0 0
  %79 = vmatpush1.bf16.msra.mxu0 0
  %80 = vmatprep.subr.bf16.mxu0 0
  %81 = vmatpush1.bf16.msra.mxu0 0
  %82 = vmatprep.mubr.bf16.mxu0 0
  %83 = vmatmul.mubr.bf16.gmra.mrb[0].mxu0 %v44
  %v84 = vpop.f32.mrb[0].mxu0
  %v85 = vadd.f32 %v25, %v84
  %v86 = vpop.f32.mrb[0].mxu0
  %v87 = vpop.f32.mrb[0].mxu0
  %v88 = vpop.f32.mrb[0].mxu0
  %89 = vdwg.mxu0
  %vm90 = vcmask 404480
  %91 = vst.msk [vmem:[%s3] sm:$0xf] %vm90, %v85
  // Predicated region
  $region14: #{_lambda_.3} parent=0 // pred_check
    _
  $region15: #{_lambda_.3} parent=0 // pred_check_branch
    %93 = sbr.rel (0) target = $region17
  $region16: #{_lambda_.3} parent=0 // pred_region
    _
  $region17: #{_lambda_.3} parent=0 // pred_fallthru
    _
  // Predicated region
  $region18: #{_lambda_.3} parent=0 // pred_check
    _
  $region19: #{_lambda_.3} parent=0 // pred_check_branch
    %95 = sbr.rel (0) target = $region21
  $region20: #{_lambda_.3} parent=0 // pred_region
    _
  $region21: #{_lambda_.3} parent=0 // pred_fallthru
    _

// kernel: _lambda_.4
$region0: #{_lambda_.4}
  #allocation0 [shape = 'u32[]', space=smem, size = 0x4, offset = 0x4, fixed_abs, tag = 'smem constant byte address 0x4 - core index']
  #allocation1 [shape = 'u32[144,128]{1,0:T(1,128)}', space=vmem, size = 0x12000, scoped, tag = 'internal scratch']
  %s0 = inlined_call_operand.vmem [shape: bf16[36,512], index: 0, kind: input, shape index: {}]
  %s1 = inlined_call_operand.vmem [shape: bf16[4,36], index: 1, kind: input, shape index: {}]
  %s2 = inlined_call_operand.vmem [shape: f32[4,1], index: 2, kind: input, shape index: {}]
  %s3 = inlined_call_operand.vmem [shape: f32[4,512], index: 3, kind: input, shape index: {}]
  %s4 = inlined_call_operand.vmem [shape: f32[4,512], index: 4, kind: input, shape index: {}]
  %s5 = inlined_call_operand.vmem [shape: f32[4,512], index: 5, kind: output, shape index: {}]
  %s6 = sld [smem:[#allocation0]]
  $region91: #{_lambda_.4} parent=0
    _
  %s8 = ssub.s32 1, %s6
  %s9 = scalar_select 0, %s8, %s6
  $region1: #{_lambda_.4} parent=0
    #allocation2 [shape = 'u8[40960]{0}', space=vmem, size = 0xa000, scoped, tag = 'input window, operand 0']
    loop: start=0, step=1, limit=4
    $region2: #{_lambda_.4} parent=1 // loop_pre_header
      _
    $region3: #{_lambda_.4} parent=1 // loop_header
      %s11 = sphi 0, %s15
      %p12 = scmp.ge.s32.totalorder %s11, 4
      %s21 = sphi 0, %s23
      %s24 = sphi 0, %s21
      %s25 = sphi 0, %s24
      %s41 = sphi 0, %s25
      %s45 = sphi 0, %s45
      %s47 = sphi 0, %s45
      %s48 = sphi 0, %s47
      %s62 = sphi 0, %s48
      %s66 = sphi 0, %s66
      %s68 = sphi 0, %s66
      %s69 = sphi 0, %s68
      %s83 = sphi 0, %s69
      %s89 = sphi 0, %s91
      %s92 = sphi 0, %s89
      %s93 = sphi 0, %s92
      %s109 = sphi 0, %s93
      %s115 = sphi 0, %s117
      %s118 = sphi 0, %s115
      %s119 = sphi 0, %s118
      %s135 = sphi 0, %s119
      %s141 = sphi 0, %s143
      %s144 = sphi 0, %s141
      %s145 = sphi 0, %s144
      %s161 = sphi 0, %s145
    $region4: #{_lambda_.4} parent=1 // loop_header_branch
      %14 = sbr.rel (%p12) target = $region8
    $region5: #{_lambda_.4} parent=1 // loop_body
      %s16 = ssub.s32 %s11, 1
      %s17 = ssub.s32 %s11, 2
      %s18 = sadd.s32 %s11, 1
      %s19 = ssub.s32 %s11, %s18
      %p20 = scmp.eq.s32.totalorder %s19, 0
      %s22 = sadd.s32 %s21, 1
      %s23 = scalar_select %p20, %s21, %s22
      %p26 = pneg %p20
      %p27 = scmp.eq.s32.totalorder %s11, 1
      %p28 = por %p26, %p27
      %p29 = scmp.ne.s32.totalorder %s21, %s24
      %p30 = scmp.eq.s32.totalorder %s11, 0
      %p31 = por %p29, %p30
      %p32 = scmp.ne.s32.totalorder %s21, %s24
      %p33 = scmp.eq.s32.totalorder %s16, 1
      %p34 = por %p32, %p33
      %p35 = scmp.ne.s32.totalorder %s24, %s25
      %p36 = scmp.eq.s32.totalorder %s16, 0
      %p37 = por %p35, %p36
      %p38 = scmp.ne.s32.totalorder %s24, %s25
      %p39 = scmp.eq.s32.totalorder %s17, 1
      %p40 = por %p38, %p39
      %p42 = scmp.ne.s32.totalorder %s25, %s41
      %p43 = scmp.eq.s32.totalorder %s17, 0
      %p44 = por %p42, %p43
      %s46 = sadd.s32 %s45, 1
      %p49 = scmp.eq.s32.totalorder %s11, 1
      %p50 = scmp.ne.s32.totalorder %s45, %s47
      %p51 = scmp.eq.s32.totalorder %s11, 0
      %p52 = por %p50, %p51
      %p53 = scmp.ne.s32.totalorder %s45, %s47
      %p54 = scmp.eq.s32.totalorder %s16, 1
      %p55 = por %p53, %p54
      %p56 = scmp.ne.s32.totalorder %s47, %s48
      %p57 = scmp.eq.s32.totalorder %s16, 0
      %p58 = por %p56, %p57
      %p59 = scmp.ne.s32.totalorder %s47, %s48
      %p60 = scmp.eq.s32.totalorder %s17, 1
      %p61 = por %p59, %p60
      %p63 = scmp.ne.s32.totalorder %s48, %s62
      %p64 = scmp.eq.s32.totalorder %s17, 0
      %p65 = por %p63, %p64
      %s67 = sadd.s32 %s66, 1
      %p70 = scmp.eq.s32.totalorder %s11, 1
      %p71 = scmp.ne.s32.totalorder %s66, %s68
      %p72 = scmp.eq.s32.totalorder %s11, 0
      %p73 = por %p71, %p72
      %p74 = scmp.ne.s32.totalorder %s66, %s68
      %p75 = scmp.eq.s32.totalorder %s16, 1
      %p76 = por %p74, %p75
      %p77 = scmp.ne.s32.totalorder %s68, %s69
      %p78 = scmp.eq.s32.totalorder %s16, 0
      %p79 = por %p77, %p78
      %p80 = scmp.ne.s32.totalorder %s68, %s69
      %p81 = scmp.eq.s32.totalorder %s17, 1
      %p82 = por %p80, %p81
      %p84 = scmp.ne.s32.totalorder %s69, %s83
      %p85 = scmp.eq.s32.totalorder %s17, 0
      %p86 = por %p84, %p85
      %s87 = ssub.s32 %s11, %s18
      %p88 = scmp.eq.s32.totalorder %s87, 0
      %s90 = sadd.s32 %s89, 1
      %s91 = scalar_select %p88, %s89, %s90
      %p94 = pneg %p88
      %p95 = scmp.eq.s32.totalorder %s11, 1
      %p96 = por %p94, %p95
      %p97 = scmp.ne.s32.totalorder %s89, %s92
      %p98 = scmp.eq.s32.totalorder %s11, 0
      %p99 = por %p97, %p98
      %p100 = scmp.ne.s32.totalorder %s89, %s92
      %p101 = scmp.eq.s32.totalorder %s16, 1
      %p102 = por %p100, %p101
      %p103 = scmp.ne.s32.totalorder %s92, %s93
      %p104 = scmp.eq.s32.totalorder %s16, 0
      %p105 = por %p103, %p104
      %p106 = scmp.ne.s32.totalorder %s92, %s93
      %p107 = scmp.eq.s32.totalorder %s17, 1
      %p108 = por %p106, %p107
      %p110 = scmp.ne.s32.totalorder %s93, %s109
      %p111 = scmp.eq.s32.totalorder %s17, 0
      %p112 = por %p110, %p111
      %s113 = ssub.s32 %s11, %s18
      %p114 = scmp.eq.s32.totalorder %s113, 0
      %s116 = sadd.s32 %s115, 1
      %s117 = scalar_select %p114, %s115, %s116
      %p120 = pneg %p114
      %p121 = scmp.eq.s32.totalorder %s11, 1
      %p122 = por %p120, %p121
      %p123 = scmp.ne.s32.totalorder %s115, %s118
      %p124 = scmp.eq.s32.totalorder %s11, 0
      %p125 = por %p123, %p124
      %p126 = scmp.ne.s32.totalorder %s115, %s118
      %p127 = scmp.eq.s32.totalorder %s16, 1
      %p128 = por %p126, %p127
      %p129 = scmp.ne.s32.totalorder %s118, %s119
      %p130 = scmp.eq.s32.totalorder %s16, 0
      %p131 = por %p129, %p130
      %p132 = scmp.ne.s32.totalorder %s118, %s119
      %p133 = scmp.eq.s32.totalorder %s17, 1
      %p134 = por %p132, %p133
      %p136 = scmp.ne.s32.totalorder %s119, %s135
      %p137 = scmp.eq.s32.totalorder %s17, 0
      %p138 = por %p136, %p137
      %s139 = ssub.s32 %s11, %s18
      %p140 = scmp.eq.s32.totalorder %s139, 0
      %s142 = sadd.s32 %s141, 1
      %s143 = scalar_select %p140, %s141, %s142
      %p146 = pneg %p140
      %p147 = scmp.eq.s32.totalorder %s11, 1
      %p148 = por %p146, %p147
      %p149 = scmp.ne.s32.totalorder %s141, %s144
      %p150 = scmp.eq.s32.totalorder %s11, 0
      %p151 = por %p149, %p150
      %p152 = scmp.ne.s32.totalorder %s141, %s144
      %p153 = scmp.eq.s32.totalorder %s16, 1
      %p154 = por %p152, %p153
      %p155 = scmp.ne.s32.totalorder %s144, %s145
      %p156 = scmp.eq.s32.totalorder %s16, 0
      %p157 = por %p155, %p156
      %p158 = scmp.ne.s32.totalorder %s144, %s145
      %p159 = scmp.eq.s32.totalorder %s17, 1
      %p160 = por %p158, %p159
      %p162 = scmp.ne.s32.totalorder %s145, %s161
      %p163 = scmp.eq.s32.totalorder %s17, 0
      %p164 = por %p162, %p163
      %p165 = scmp.le.s32.totalorder 1, %s11
      %p166 = scmp.lt.s32.totalorder %s11, 3
      %p167 = pnand %p165, %p166
      %p168 = pneg %p167
      // Predicated region
      $region9: #{_lambda_.4} parent=5 // pred_check
        _
      $region10: #{_lambda_.4} parent=5 // pred_check_branch
        %170 = sbr.rel (%p167) target = $region12
      $region11: #{_lambda_.4} parent=5 // pred_region
        %s171 = ssub.s32 %s11, 1
        // Predicated region
        $region13: #{_lambda_.4} parent=11 // pred_check
          %p172 = pneg %p58
        $region14: #{_lambda_.4} parent=11 // pred_check_branch
          %174 = sbr.rel (%p172) target = $region16
        $region15: #{_lambda_.4} parent=11 // pred_region
          _
        $region16: #{_lambda_.4} parent=11 // pred_fallthru
          _
        // Predicated region
        $region17: #{_lambda_.4} parent=11 // pred_check
          %p175 = pneg %p79
        $region18: #{_lambda_.4} parent=11 // pred_check_branch
          %177 = sbr.rel (%p175) target = $region20
        $region19: #{_lambda_.4} parent=11 // pred_region
          _
        $region20: #{_lambda_.4} parent=11 // pred_fallthru
          _
      $region12: #{_lambda_.4} parent=5 // pred_fallthru
        _
      %p178 = scmp.lt.s32.totalorder %s11, 2
      // Predicated region
      $region21: #{_lambda_.4} parent=5 // pred_check
        %p179 = pneg %p178
      $region22: #{_lambda_.4} parent=5 // pred_check_branch
        %181 = sbr.rel (%p179) target = $region24
      $region23: #{_lambda_.4} parent=5 // pred_region
        // Predicated region
        $region25: #{_lambda_.4} parent=23 // pred_check
          %p182 = pneg %p31
        $region26: #{_lambda_.4} parent=23 // pred_check_branch
          %184 = sbr.rel (%p182) target = $region28
        $region27: #{_lambda_.4} parent=23 // pred_region
          %s185 = sand.u32 %s21, 1
          %s186 = sand.u32 %s21, 1
          %s187 = smul.addr %s186, 40
          %s188 = scalar_lea.vmem [#allocation2], %s187
          %s189 = smul.u32 2, %s11
          %s190 = smul.addr %s189, 4
          %s191 = scalar_lea.vmem %s0, %s190
          // Predicated region
          $region29: #{_lambda_.4} parent=27 // pred_check
            _
          $region30: #{_lambda_.4} parent=27 // pred_check_branch
            %193 = sbr.rel (0) target = $region32
          $region31: #{_lambda_.4} parent=27 // pred_region
            // Predicated region
            $region33: #{_lambda_.4} parent=31 // pred_check
              _
            $region34: #{_lambda_.4} parent=31 // pred_check_branch
              %195 = sbr.rel (0) target = $region36
            $region35: #{_lambda_.4} parent=31 // pred_region
              // Predicated region
              $region48: #{_lambda_.4} parent=35 // pred_check
                _
              $region49: #{_lambda_.4} parent=35 // pred_check_branch
                %218 = sbr.rel (0) target = $region51
              $region50: #{_lambda_.4} parent=35 // pred_region
                loop: start=0, step=1, limit=1
                $region52: #{_lambda_.4} parent=50 // loop_pre_header
                  _
                $region53: #{_lambda_.4} parent=50 // loop_header
                  %s220 = sphi 0, %s224
                  %p221 = scmp.ge.s32.totalorder %s220, 1
                  %s225 = sphi %s191, %s191
                  %s226 = sphi %s188, %s188
                $region54: #{_lambda_.4} parent=50 // loop_header_branch
                  %223 = sbr.rel (%p221) target = $region58
                $region55: #{_lambda_.4} parent=50 // loop_body
                  %v227 = vld [vmem:[%s225] sm:$0xff]
                  %228 = vst [vmem:[%s226] sm:$0xff] %v227
                  %v229 = vld [vmem:[%s225 + $0x10] sm:$0xff]
                  %230 = vst [vmem:[%s226 + $0x8] sm:$0xff] %v229
                  %v231 = vld [vmem:[%s225 + $0x20] sm:$0xff]
                  %232 = vst [vmem:[%s226 + $0x10] sm:$0xff] %v231
                  %v233 = vld [vmem:[%s225 + $0x30] sm:$0xff]
                  %234 = vst [vmem:[%s226 + $0x18] sm:$0xff] %v233
                  %v235 = vld [vmem:[%s225 + $0x40] sm:$0xff]
                  %236 = vst [vmem:[%s226 + $0x20] sm:$0xff] %v235
                $region56: #{_lambda_.4} parent=50 // loop_footer
                  %s224 = sadd.s32 1, %s220
                $region57: #{_lambda_.4} parent=50 // loop_footer_branch
                  %219 = sbr.rel target = $region53
                $region58: #{_lambda_.4} parent=50 // loop_exit
                  _
              $region51: #{_lambda_.4} parent=35 // pred_fallthru
                _
              // Predicated region
              $region59: #{_lambda_.4} parent=35 // pred_check
                _
              $region60: #{_lambda_.4} parent=35 // pred_check_branch
                %238 = sbr.rel target = $region62
              $region61: #{_lambda_.4} parent=35 // pred_region
                _
              $region62: #{_lambda_.4} parent=35 // pred_fallthru
                _
            $region36: #{_lambda_.4} parent=31 // pred_fallthru
              _
            // Predicated region
            $region37: #{_lambda_.4} parent=31 // pred_check
              _
            $region38: #{_lambda_.4} parent=31 // pred_check_branch
              %197 = sbr.rel target = $region40
            $region39: #{_lambda_.4} parent=31 // pred_region
              loop: start=0, step=1, limit=1
              $region41: #{_lambda_.4} parent=39 // loop_pre_header
                _
              $region42: #{_lambda_.4} parent=39 // loop_header
                %s200 = sphi 0, %s204
                %p201 = scmp.ge.s32.totalorder %s200, 1
                %s205 = sphi %s191, %s191
                %s206 = sphi %s188, %s188
              $region43: #{_lambda_.4} parent=39 // loop_header_branch
                %203 = sbr.rel (%p201) target = $region47
              $region44: #{_lambda_.4} parent=39 // loop_body
                %v207 = vld [vmem:[%s205] sm:$0xff]
                %208 = vst [vmem:[%s206] sm:$0xff] %v207
                %v209 = vld [vmem:[%s205 + $0x10] sm:$0xff]
                %210 = vst [vmem:[%s206 + $0x8] sm:$0xff] %v209
                %v211 = vld [vmem:[%s205 + $0x20] sm:$0xff]
                %212 = vst [vmem:[%s206 + $0x10] sm:$0xff] %v211
                %v213 = vld [vmem:[%s205 + $0x30] sm:$0xff]
                %214 = vst [vmem:[%s206 + $0x18] sm:$0xff] %v213
                %v215 = vld [vmem:[%s205 + $0x40] sm:$0xff]
                %216 = vst [vmem:[%s206 + $0x20] sm:$0xff] %v215
              $region45: #{_lambda_.4} parent=39 // loop_footer
                %s204 = sadd.s32 1, %s200
              $region46: #{_lambda_.4} parent=39 // loop_footer_branch
                %199 = sbr.rel target = $region42
              $region47: #{_lambda_.4} parent=39 // loop_exit
                _
            $region40: #{_lambda_.4} parent=31 // pred_fallthru
              _
          $region32: #{_lambda_.4} parent=27 // pred_fallthru
            _
          %239 = vnop
        $region28: #{_lambda_.4} parent=23 // pred_fallthru
          _
        // Predicated region
        $region63: #{_lambda_.4} parent=23 // pred_check
          %p240 = pneg %p99
        $region64: #{_lambda_.4} parent=23 // pred_check_branch
          %242 = sbr.rel (%p240) target = $region66
        $region65: #{_lambda_.4} parent=23 // pred_region
          %s243 = smul.u32 2, %s11
          %p244 = scmp.lt.s32.totalorder %s243, 3
          %s245 = scalar_select %p244, %s243, 3
          %s246 = smul.addr %s245, 4
          %s247 = scalar_lea.vmem %s3, %s246
          %s248 = smul.u32 2, %s11
        $region66: #{_lambda_.4} parent=23 // pred_fallthru
          _
        // Predicated region
        $region67: #{_lambda_.4} parent=23 // pred_check
          %p249 = pneg %p125
        $region68: #{_lambda_.4} parent=23 // pred_check_branch
          %251 = sbr.rel (%p249) target = $region70
        $region69: #{_lambda_.4} parent=23 // pred_region
          %s252 = smul.u32 2, %s11
          %p253 = scmp.lt.s32.totalorder %s252, 3
          %s254 = scalar_select %p253, %s252, 3
          %s255 = smul.addr %s254, 4
          %s256 = scalar_lea.vmem %s4, %s255
          %s257 = smul.u32 2, %s11
        $region70: #{_lambda_.4} parent=23 // pred_fallthru
          _
      $region24: #{_lambda_.4} parent=5 // pred_fallthru
        _
      %p258 = scmp.le.s32.totalorder 1, %s11
      %p259 = scmp.lt.s32.totalorder %s11, 3
      %p260 = pnand %p258, %p259
      %p261 = pneg %p260
      // Predicated region
      $region71: #{_lambda_.4} parent=5 // pred_check
        _
      $region72: #{_lambda_.4} parent=5 // pred_check_branch
        %263 = sbr.rel (%p260) target = $region74
      $region73: #{_lambda_.4} parent=5 // pred_region
        %s264 = ssub.s32 %s11, 1
        %s265 = sand.u32 %s24, 1
        %s266 = sand.u32 %s24, 1
        %s267 = smul.addr %s266, 40
        %s268 = scalar_lea.vmem [#allocation2], %s267
        // Predicated region
        $region75: #{_lambda_.4} parent=73 // pred_check
          %p269 = pneg %p37
        $region76: #{_lambda_.4} parent=73 // pred_check_branch
          %271 = sbr.rel (%p269) target = $region78
        $region77: #{_lambda_.4} parent=73 // pred_region
          _
        $region78: #{_lambda_.4} parent=73 // pred_fallthru
          _
        %s272 = sand.u32 %s24, 1
        %s273 = sand.u32 %s24, 1
        %s274 = smul.addr %s273, 40
        %s275 = scalar_lea.vmem [#allocation2], %s274
        %p276 = pneg %p37
        %p277 = pneg %p34
        %p278 = pneg %p58
        %p279 = pneg %p55
        %p280 = pneg %p79
        %p281 = pneg %p76
        %s282 = smul.u32 2, %s16
        %p283 = scmp.lt.s32.totalorder %s282, 3
        %s284 = scalar_select %p283, %s282, 3
        %s285 = smul.addr %s284, 4
        %s286 = scalar_lea.vmem %s3, %s285
        %p287 = pneg %p105
        %p288 = pneg %p102
        %s289 = smul.u32 2, %s16
        %p290 = scmp.lt.s32.totalorder %s289, 3
        %s291 = scalar_select %p290, %s289, 3
        %s292 = smul.addr %s291, 4
        %s293 = scalar_lea.vmem %s4, %s292
        %p294 = pneg %p131
        %p295 = pneg %p128
        %p296 = pneg %p157
        %p297 = pneg %p154
        %s298 = smul.u32 2, %s16
        %p299 = scmp.lt.s32.totalorder %s298, 3
        %s300 = scalar_select %p299, %s298, 3
        %s301 = smul.addr %s300, 4
        %s302 = scalar_lea.vmem %s5, %s301
        %s303 = smul.u32 2, %s16
        %s304 = smul.u32 2, %s16
        %p305 = scmp.lt.s32.totalorder %s304, 3
        %s306 = scalar_select %p305, %s304, 3
        %s307 = smul.addr %s306, 4
        %s308 = scalar_lea.vmem %s3, %s307
        %s309 = smul.u32 2, %s16
        %s310 = smul.u32 2, %s16
        %p311 = scmp.lt.s32.totalorder %s310, 3
        %s312 = scalar_select %p311, %s310, 3
        %s313 = smul.addr %s312, 4
        %s314 = scalar_lea.vmem %s4, %s313
        %s315 = smul.u32 2, %s16
        %s316 = smul.u32 2, %s16
        %p317 = scmp.lt.s32.totalorder %s316, 3
        %s318 = scalar_select %p317, %s316, 3
        %s319 = smul.addr %s318, 4
        %s320 = scalar_lea.vmem %s5, %s319
        %s321 = smul.u32 2, %s16
        %v323 = vld [vmem:[%s1] sm:$0x3]
        %v324 = vld [vmem:[%s268] sm:$0xff]
        %v325 = vld [vmem:[%s268 + $0x8] sm:$0xff]
        %v326 = vld [vmem:[%s268 + $0x10] sm:$0xff]
        %v327 = vld [vmem:[%s268 + $0x18] sm:$0xff]
        %v328 = vld [vmem:[%s268 + $0x20] sm:$0x33]
        %v329 = vld [vmem:[%s2] sm:$0xf]
        %331 = vset.pattern.permute.xlu0 0
        %332 = vperm.xlu0 %331, %v329
        %v333 = vpop.permute.xlu0 %332
        %v340 = vunpack.c.l.b16 %v324
        %v341 = vunpack.c.h.b16 %v324
        %v342 = vunpack.c.l.b16 %v325
        %v343 = vunpack.c.h.b16 %v325
        %v344 = vunpack.c.l.b16 %v326
        %v345 = vunpack.c.h.b16 %v326
        %v346 = vunpack.c.l.b16 %v327
        %v347 = vunpack.c.h.b16 %v327
        %v348 = vunpack.c.l.b16 %v328
        %v349 = vunpack.c.h.b16 %v328
        %v350 = vpack.c.b16 %v342, %v340
        %v351 = vpack.c.b16 %v343, %v341
        %v352 = vpack.c.b16 %v346, %v344
        %v353 = vpack.c.b16 %v347, %v345
        %v354 = vpack.c.b16 %v348, %v348
        %v355 = vpack.c.b16 %v349, %v349
        %vm360 = vcmask 293888
        %v362 = vsel %vm360, %v323, 0
        %vm364 = vcmask 1041408
        %v366 = vsel %vm364, %v354, 0
        %v369 = vsel %vm364, %v355, 0
        %371 = vmatprep.subr.bf16.mxu0 %v351
        %372 = vmatpush1.bf16.msra.mxu0 %v350
        %373 = vmatprep.subr.bf16.mxu0 %v353
        %374 = vmatpush1.bf16.msra.mxu0 %v352
        %375 = vmatprep.subr.bf16.mxu0 %v369
        %376 = vmatpush1.bf16.msra.mxu0 %v366
        %377 = vmatprep.subr.bf16.mxu0 0
        %378 = vmatpush1.bf16.msra.mxu0 0
        %379 = vmatprep.subr.bf16.mxu0 0
        %380 = vmatpush1.bf16.msra.mxu0 0
        %381 = vmatprep.subr.bf16.mxu0 0
        %382 = vmatpush1.bf16.msra.mxu0 0
        %383 = vmatprep.subr.bf16.mxu0 0
        %384 = vmatpush1.bf16.msra.mxu0 0
        %385 = vmatprep.subr.bf16.mxu0 0
        %386 = vmatpush1.bf16.msra.mxu0 0
        %387 = vmatprep.subr.bf16.mxu0 0
        %388 = vmatpush1.bf16.msra.mxu0 0
        %389 = vmatprep.subr.bf16.mxu0 0
        %390 = vmatpush1.bf16.msra.mxu0 0
        %391 = vmatprep.subr.bf16.mxu0 0
        %392 = vmatpush1.bf16.msra.mxu0 0
        %393 = vmatprep.subr.bf16.mxu0 0
        %394 = vmatpush1.bf16.msra.mxu0 0
        %395 = vmatprep.subr.bf16.mxu0 0
        %396 = vmatpush1.bf16.msra.mxu0 0
        %397 = vmatprep.subr.bf16.mxu0 0
        %398 = vmatpush1.bf16.msra.mxu0 0
        %399 = vmatprep.subr.bf16.mxu0 0
        %400 = vmatpush1.bf16.msra.mxu0 0
        %401 = vmatprep.subr.bf16.mxu0 0
        %402 = vmatpush1.bf16.msra.mxu0 0
        %403 = vmatprep.mubr.bf16.mxu0 0
        %404 = vmatmul.mubr.bf16.gmra.mrb[0].mxu0 %v362
        %v405 = vpop.f32.mrb[0].mxu0
        %v406 = vadd.f32 %v333, %v405
        %v407 = vpop.f32.mrb[0].mxu0
        %v408 = vadd.f32 %v333, %v407
        %v409 = vpop.f32.mrb[0].mxu0
        %v410 = vpop.f32.mrb[0].mxu0
        %411 = vdwg.mxu0
        %v412 = vld [vmem:[%s308] sm:$0xff]
        %v413 = vld [vmem:[%s314] sm:$0xff]
        %v414 = vadd.f32 %v412, %v413
        %v415 = vxor.u32 %v414, 2147483648
        %v416 = vmul.f32 %v415, 1.442695
        %v417 = vpow.pop %v416
        %v418 = vadd.f32 %v417, 1.0
        %v419 = vrcp.pop %v418
        %v420 = vmul.f32 1.0, %v419
        %v422 = vcombine.high %v420, %v420
        %v424 = vmul.f32 %v406, %v420
        %v425 = vmul.f32 %v408, %v422
        %v428 = vcombine.low %v424, %v425
        %430 = vst [vmem:[%s320] sm:$0xff] %v428
        %s431 = smul.u32 2, %s16
        %p432 = scmp.lt.s32.totalorder %s431, 3
        %s433 = scalar_select %p432, %s431, 3
        %s434 = smul.addr %s433, 4
        %s435 = scalar_lea.vmem %s5, %s434
        // Predicated region
        $region79: #{_lambda_.4} parent=73 // pred_check
          %p436 = pneg %p154
        $region80: #{_lambda_.4} parent=73 // pred_check_branch
          %438 = sbr.rel (%p436) target = $region82
        $region81: #{_lambda_.4} parent=73 // pred_region
          %s439 = smul.u32 2, %s16
        $region82: #{_lambda_.4} parent=73 // pred_fallthru
          _
      $region74: #{_lambda_.4} parent=5 // pred_fallthru
        _
      %p440 = scmp.le.s32.totalorder 2, %s11
      // Predicated region
      $region83: #{_lambda_.4} parent=5 // pred_check
        %p441 = pneg %p440
      $region84: #{_lambda_.4} parent=5 // pred_check_branch
        %443 = sbr.rel (%p441) target = $region86
      $region85: #{_lambda_.4} parent=5 // pred_region
        %s444 = ssub.s32 %s11, 2
        // Predicated region
        $region87: #{_lambda_.4} parent=85 // pred_check
          %p445 = pneg %p160
        $region88: #{_lambda_.4} parent=85 // pred_check_branch
          %447 = sbr.rel (%p445) target = $region90
        $region89: #{_lambda_.4} parent=85 // pred_region
          %s448 = smul.u32 2, %s17
          %p449 = scmp.lt.s32.totalorder %s448, 3
          %s450 = scalar_select %p449, %s448, 3
          %s451 = smul.addr %s450, 4
          %s452 = scalar_lea.vmem %s5, %s451
        $region90: #{_lambda_.4} parent=85 // pred_fallthru
          _
      $region86: #{_lambda_.4} parent=5 // pred_fallthru
        _
    $region6: #{_lambda_.4} parent=1 // loop_footer
      %s15 = sadd.s32 1, %s11
    $region7: #{_lambda_.4} parent=1 // loop_footer_branch
      %10 = sbr.rel target = $region3
    $region8: #{_lambda_.4} parent=1 // loop_exit
      _

// kernel: _lambda_.5
$region0: #{_lambda_.5}
  #allocation0 [shape = 'u32[]', space=smem, size = 0x4, offset = 0x4, fixed_abs, tag = 'smem constant byte address 0x4 - core index']
  #allocation1 [shape = 'u32[144,128]{1,0:T(1,128)}', space=vmem, size = 0x12000, scoped, tag = 'internal scratch']
  %s0 = inlined_call_operand.vmem [shape: bf16[2,36,128], index: 0, kind: input, shape index: {}]
  %s1 = inlined_call_operand.vmem [shape: bf16[2,8,36], index: 1, kind: input, shape index: {}]
  %s2 = inlined_call_operand.vmem [shape: f32[2,8,1], index: 2, kind: input, shape index: {}]
  %s3 = inlined_call_operand.vmem [shape: f32[16,128], index: 3, kind: output, shape index: {}]
  %s4 = sld [smem:[#allocation0]]
  $region45: #{_lambda_.5} parent=0
    _
  %s6 = ssub.s32 1, %s4
  %s7 = scalar_select 0, %s6, %s4
  loop: start=0, step=1, limit=4
  $region2: #{_lambda_.5} parent=0 // loop_pre_header
    _
  $region3: #{_lambda_.5} parent=0 // loop_header
    %s9 = sphi 0, %s13
    %p10 = scmp.ge.s32.totalorder %s9, 4
    %s16 = sphi 0, %s28
    %s17 = sphi 0, %s24
    %s18 = sphi 0, %s16
    %s19 = sphi 0, %s17
    %s20 = sphi 0, %s18
    %s21 = sphi 0, %s19
    %s33 = sphi 0, %s35
    %s36 = sphi 0, %s33
    %s37 = sphi 0, %s36
    %s53 = sphi 0, %s37
    %s59 = sphi 0, %s61
    %s62 = sphi 0, %s59
    %s63 = sphi 0, %s62
    %s79 = sphi 0, %s63
    %s85 = sphi 0, %s87
    %s88 = sphi 0, %s85
    %s89 = sphi 0, %s88
    %s105 = sphi 0, %s89
    %s113 = sphi 0, %s115
    %s116 = sphi 0, %s113
    %s117 = sphi 0, %s116
    %s133 = sphi 0, %s117
  $region4: #{_lambda_.5} parent=0 // loop_header_branch
    %12 = sbr.rel (%p10) target = $region8
  $region5: #{_lambda_.5} parent=0 // loop_body
    %s14 = ssub.s32 %s9, 1
    %s15 = ssub.s32 %s9, 2
    %s22 = sadd.s32 1, %s17
    %p23 = scmp.ge.s32.totalorder %s22, 1
    %s24 = scalar_select %p23, 0, %s22
    %s25 = sadd.s32 1, %s16
    %s26 = scalar_select %p23, %s25, %s16
    %p27 = scmp.ge.s32.totalorder %s26, 2
    %s28 = scalar_select %p27, 0, %s26
    %s29 = ssub.s32 %s16, %s28
    %s30 = ssub.s32 %s17, %s24
    %s31 = sor.u32 %s29, %s30
    %p32 = scmp.eq.s32.totalorder %s31, 0
    %s34 = sadd.s32 %s33, 1
    %s35 = scalar_select %p32, %s33, %s34
    %p38 = pneg %p32
    %p39 = scmp.eq.s32.totalorder %s9, 1
    %p40 = por %p38, %p39
    %p41 = scmp.ne.s32.totalorder %s33, %s36
    %p42 = scmp.eq.s32.totalorder %s9, 0
    %p43 = por %p41, %p42
    %p44 = scmp.ne.s32.totalorder %s33, %s36
    %p45 = scmp.eq.s32.totalorder %s14, 1
    %p46 = por %p44, %p45
    %p47 = scmp.ne.s32.totalorder %s36, %s37
    %p48 = scmp.eq.s32.totalorder %s14, 0
    %p49 = por %p47, %p48
    %p50 = scmp.ne.s32.totalorder %s36, %s37
    %p51 = scmp.eq.s32.totalorder %s15, 1
    %p52 = por %p50, %p51
    %p54 = scmp.ne.s32.totalorder %s37, %s53
    %p55 = scmp.eq.s32.totalorder %s15, 0
    %p56 = por %p54, %p55
    %s57 = ssub.s32 %s16, %s28
    %p58 = scmp.eq.s32.totalorder %s57, 0
    %s60 = sadd.s32 %s59, 1
    %s61 = scalar_select %p58, %s59, %s60
    %p64 = pneg %p58
    %p65 = scmp.eq.s32.totalorder %s9, 1
    %p66 = por %p64, %p65
    %p67 = scmp.ne.s32.totalorder %s59, %s62
    %p68 = scmp.eq.s32.totalorder %s9, 0
    %p69 = por %p67, %p68
    %p70 = scmp.ne.s32.totalorder %s59, %s62
    %p71 = scmp.eq.s32.totalorder %s14, 1
    %p72 = por %p70, %p71
    %p73 = scmp.ne.s32.totalorder %s62, %s63
    %p74 = scmp.eq.s32.totalorder %s14, 0
    %p75 = por %p73, %p74
    %p76 = scmp.ne.s32.totalorder %s62, %s63
    %p77 = scmp.eq.s32.totalorder %s15, 1
    %p78 = por %p76, %p77
    %p80 = scmp.ne.s32.totalorder %s63, %s79
    %p81 = scmp.eq.s32.totalorder %s15, 0
    %p82 = por %p80, %p81
    %s83 = ssub.s32 %s16, %s28
    %p84 = scmp.eq.s32.totalorder %s83, 0
    %s86 = sadd.s32 %s85, 1
    %s87 = scalar_select %p84, %s85, %s86
    %p90 = pneg %p84
    %p91 = scmp.eq.s32.totalorder %s9, 1
    %p92 = por %p90, %p91
    %p93 = scmp.ne.s32.totalorder %s85, %s88
    %p94 = scmp.eq.s32.totalorder %s9, 0
    %p95 = por %p93, %p94
    %p96 = scmp.ne.s32.totalorder %s85, %s88
    %p97 = scmp.eq.s32.totalorder %s14, 1
    %p98 = por %p96, %p97
    %p99 = scmp.ne.s32.totalorder %s88, %s89
    %p100 = scmp.eq.s32.totalorder %s14, 0
    %p101 = por %p99, %p100
    %p102 = scmp.ne.s32.totalorder %s88, %s89
    %p103 = scmp.eq.s32.totalorder %s15, 1
    %p104 = por %p102, %p103
    %p106 = scmp.ne.s32.totalorder %s89, %s105
    %p107 = scmp.eq.s32.totalorder %s15, 0
    %p108 = por %p106, %p107
    %s109 = ssub.s32 %s16, %s28
    %s110 = ssub.s32 %s17, %s24
    %s111 = sor.u32 %s109, %s110
    %p112 = scmp.eq.s32.totalorder %s111, 0
    %s114 = sadd.s32 %s113, 1
    %s115 = scalar_select %p112, %s113, %s114
    %p118 = pneg %p112
    %p119 = scmp.eq.s32.totalorder %s9, 1
    %p120 = por %p118, %p119
    %p121 = scmp.ne.s32.totalorder %s113, %s116
    %p122 = scmp.eq.s32.totalorder %s9, 0
    %p123 = por %p121, %p122
    %p124 = scmp.ne.s32.totalorder %s113, %s116
    %p125 = scmp.eq.s32.totalorder %s14, 1
    %p126 = por %p124, %p125
    %p127 = scmp.ne.s32.totalorder %s116, %s117
    %p128 = scmp.eq.s32.totalorder %s14, 0
    %p129 = por %p127, %p128
    %p130 = scmp.ne.s32.totalorder %s116, %s117
    %p131 = scmp.eq.s32.totalorder %s15, 1
    %p132 = por %p130, %p131
    %p134 = scmp.ne.s32.totalorder %s117, %s133
    %p135 = scmp.eq.s32.totalorder %s15, 0
    %p136 = por %p134, %p135
    %p137 = scmp.le.s32.totalorder 1, %s9
    %p138 = scmp.lt.s32.totalorder %s9, 3
    %p139 = pnand %p137, %p138
    %p140 = pneg %p139
    // Predicated region
    $region9: #{_lambda_.5} parent=5 // pred_check
      _
    $region10: #{_lambda_.5} parent=5 // pred_check_branch
      %142 = sbr.rel (%p139) target = $region12
    $region11: #{_lambda_.5} parent=5 // pred_region
      %s143 = ssub.s32 %s9, 1
    $region12: #{_lambda_.5} parent=5 // pred_fallthru
      _
    %p144 = scmp.lt.s32.totalorder %s9, 2
    // Predicated region
    $region13: #{_lambda_.5} parent=5 // pred_check
      %p145 = pneg %p144
    $region14: #{_lambda_.5} parent=5 // pred_check_branch
      %147 = sbr.rel (%p145) target = $region16
    $region15: #{_lambda_.5} parent=5 // pred_region
      // Predicated region
      $region17: #{_lambda_.5} parent=15 // pred_check
        %p148 = pneg %p43
      $region18: #{_lambda_.5} parent=15 // pred_check_branch
        %150 = sbr.rel (%p148) target = $region20
      $region19: #{_lambda_.5} parent=15 // pred_region
        %p151 = scmp.lt.s32.totalorder %s16, 1
        %s152 = scalar_select %p151, %s16, 1
        %p153 = scmp.lt.s32.totalorder %s17, 0
        %s154 = scalar_select %p153, %s17, 0
        %s155 = smul.addr %s152, 5
        %s156 = sadd.s32 %s154, %s155
        %s157 = smul.addr %s156, 4
        %s158 = scalar_lea.vmem %s0, %s157
      $region20: #{_lambda_.5} parent=15 // pred_fallthru
        _
      // Predicated region
      $region21: #{_lambda_.5} parent=15 // pred_check
        %p159 = pneg %p69
      $region22: #{_lambda_.5} parent=15 // pred_check_branch
        %161 = sbr.rel (%p159) target = $region24
      $region23: #{_lambda_.5} parent=15 // pred_region
        %p162 = scmp.lt.s32.totalorder %s16, 1
        %s163 = scalar_select %p162, %s16, 1
        %s164 = smul.addr %s163, 4
        %s165 = scalar_lea.vmem %s1, %s164
      $region24: #{_lambda_.5} parent=15 // pred_fallthru
        _
      // Predicated region
      $region25: #{_lambda_.5} parent=15 // pred_check
        %p166 = pneg %p95
      $region26: #{_lambda_.5} parent=15 // pred_check_branch
        %168 = sbr.rel (%p166) target = $region28
      $region27: #{_lambda_.5} parent=15 // pred_region
        %p169 = scmp.lt.s32.totalorder %s16, 1
        %s170 = scalar_select %p169, %s16, 1
        %s171 = smul.addr %s170, 8
        %s172 = scalar_lea.vmem %s2, %s171
      $region28: #{_lambda_.5} parent=15 // pred_fallthru
        _
    $region16: #{_lambda_.5} parent=5 // pred_fallthru
      _
    %p173 = scmp.le.s32.totalorder 1, %s9
    %p174 = scmp.lt.s32.totalorder %s9, 3
    %p175 = pnand %p173, %p174
    %p176 = pneg %p175
    // Predicated region
    $region29: #{_lambda_.5} parent=5 // pred_check
      _
    $region30: #{_lambda_.5} parent=5 // pred_check_branch
      %178 = sbr.rel (%p175) target = $region32
    $region31: #{_lambda_.5} parent=5 // pred_region
      %s179 = ssub.s32 %s9, 1
      %p180 = scmp.lt.s32.totalorder %s18, 1
      %s181 = scalar_select %p180, %s18, 1
      %p182 = scmp.lt.s32.totalorder %s19, 0
      %s183 = scalar_select %p182, %s19, 0
      %s184 = smul.addr %s181, 5
      %s185 = sadd.s32 %s183, %s184
      %s186 = smul.addr %s185, 4
      %s187 = scalar_lea.vmem %s0, %s186
      %p188 = pneg %p49
      %p189 = pneg %p46
      %p190 = scmp.lt.s32.totalorder %s18, 1
      %s191 = scalar_select %p190, %s18, 1
      %s192 = smul.addr %s191, 4
      %s193 = scalar_lea.vmem %s1, %s192
      %p194 = pneg %p75
      %p195 = pneg %p72
      %p196 = scmp.lt.s32.totalorder %s18, 1
      %s197 = scalar_select %p196, %s18, 1
      %s198 = smul.addr %s197, 8
      %s199 = scalar_lea.vmem %s2, %s198
      %p200 = pneg %p101
      %p201 = pneg %p98
      %p202 = pneg %p129
      %p203 = pneg %p126
      %p204 = scmp.lt.s32.totalorder %s18, 1
      %s205 = scalar_select %p204, %s18, 1
      %p206 = scmp.lt.s32.totalorder %s19, 0
      %s207 = scalar_select %p206, %s19, 0
      %s208 = sadd.s32 %s207, %s205
      %s209 = smul.addr %s208, 8
      %s210 = scalar_lea.vmem %s3, %s209
      %p211 = scmp.lt.s32.totalorder %s18, 1
      %s212 = scalar_select %p211, %s18, 1
      %p213 = scmp.lt.s32.totalorder %s19, 0
      %s214 = scalar_select %p213, %s19, 0
      %s215 = smul.addr %s212, 5
      %s216 = sadd.s32 %s214, %s215
      %s217 = smul.addr %s216, 4
      %s218 = scalar_lea.vmem %s0, %s217
      %p219 = scmp.lt.s32.totalorder %s18, 1
      %s220 = scalar_select %p219, %s18, 1
      %s221 = smul.addr %s220, 4
      %s222 = scalar_lea.vmem %s1, %s221
      %p223 = scmp.lt.s32.totalorder %s18, 1
      %s224 = scalar_select %p223, %s18, 1
      %s225 = smul.addr %s224, 8
      %s226 = scalar_lea.vmem %s2, %s225
      %p227 = scmp.lt.s32.totalorder %s18, 1
      %s228 = scalar_select %p227, %s18, 1
      %p229 = scmp.lt.s32.totalorder %s19, 0
      %s230 = scalar_select %p229, %s19, 0
      %s231 = sadd.s32 %s230, %s228
      %s232 = smul.addr %s231, 8
      %s233 = scalar_lea.vmem %s3, %s232
      %v235 = vld [vmem:[%s222] sm:$0xf]
      %v236 = vld [vmem:[%s218] sm:$0xf]
      %v237 = vld [vmem:[%s218 + $0x4] sm:$0xf]
      %v238 = vld [vmem:[%s218 + $0x8] sm:$0xf]
      %v239 = vld [vmem:[%s218 + $0xc] sm:$0xf]
      %v240 = vld [vmem:[%s218 + $0x10] sm:$0x3]
      %v241 = vld [vmem:[%s226] sm:$0xff]
      %243 = vset.pattern.permute.xlu0 0
      %244 = vperm.xlu0 %243, %v241
      %v245 = vpop.permute.xlu0 %244
      %v252 = vunpack.c.l.b16 %v236
      %v253 = vunpack.c.l.b16 %v237
      %v254 = vunpack.c.l.b16 %v238
      %v255 = vunpack.c.l.b16 %v239
      %v256 = vunpack.c.l.b16 %v240
      %v257 = vpack.c.b16 %v253, %v252
      %v258 = vpack.c.b16 %v255, %v254
      %v259 = vpack.c.b16 %v256, %v256
      %vm262 = vcmask 293888
      %v264 = vsel %vm262, %v235, 0
      %vm266 = vcmask 1041408
      %v268 = vsel %vm266, %v259, 0
      %270 = vmatprep.subr.bf16.mxu0 0
      %271 = vmatpush1.bf16.msra.mxu0 %v257
      %272 = vmatprep.subr.bf16.mxu0 0
      %273 = vmatpush1.bf16.msra.mxu0 %v258
      %274 = vmatprep.subr.bf16.mxu0 0
      %275 = vmatpush1.bf16.msra.mxu0 %v268
      %276 = vmatprep.subr.bf16.mxu0 0
      %277 = vmatpush1.bf16.msra.mxu0 0
      %278 = vmatprep.subr.bf16.mxu0 0
      %279 = vmatpush1.bf16.msra.mxu0 0
      %280 = vmatprep.subr.bf16.mxu0 0
      %281 = vmatpush1.bf16.msra.mxu0 0
      %282 = vmatprep.subr.bf16.mxu0 0
      %283 = vmatpush1.bf16.msra.mxu0 0
      %284 = vmatprep.subr.bf16.mxu0 0
      %285 = vmatpush1.bf16.msra.mxu0 0
      %286 = vmatprep.subr.bf16.mxu0 0
      %287 = vmatpush1.bf16.msra.mxu0 0
      %288 = vmatprep.subr.bf16.mxu0 0
      %289 = vmatpush1.bf16.msra.mxu0 0
      %290 = vmatprep.subr.bf16.mxu0 0
      %291 = vmatpush1.bf16.msra.mxu0 0
      %292 = vmatprep.subr.bf16.mxu0 0
      %293 = vmatpush1.bf16.msra.mxu0 0
      %294 = vmatprep.subr.bf16.mxu0 0
      %295 = vmatpush1.bf16.msra.mxu0 0
      %296 = vmatprep.subr.bf16.mxu0 0
      %297 = vmatpush1.bf16.msra.mxu0 0
      %298 = vmatprep.subr.bf16.mxu0 0
      %299 = vmatpush1.bf16.msra.mxu0 0
      %300 = vmatprep.subr.bf16.mxu0 0
      %301 = vmatpush1.bf16.msra.mxu0 0
      %302 = vmatprep.mubr.bf16.mxu0 0
      %303 = vmatmul.mubr.bf16.gmra.mrb[0].mxu0 %v264
      %v304 = vpop.f32.mrb[0].mxu0
      %v305 = vadd.f32 %v245, %v304
      %v306 = vpop.f32.mrb[0].mxu0
      %v307 = vpop.f32.mrb[0].mxu0
      %v308 = vpop.f32.mrb[0].mxu0
      %309 = vdwg.mxu0
      %310 = vst [vmem:[%s233] sm:$0xff] %v305
      %p311 = scmp.lt.s32.totalorder %s18, 1
      %s312 = scalar_select %p311, %s18, 1
      %p313 = scmp.lt.s32.totalorder %s19, 0
      %s314 = scalar_select %p313, %s19, 0
      %s315 = sadd.s32 %s314, %s312
      %s316 = smul.addr %s315, 8
      %s317 = scalar_lea.vmem %s3, %s316
      // Predicated region
      $region33: #{_lambda_.5} parent=31 // pred_check
        %p318 = pneg %p126
      $region34: #{_lambda_.5} parent=31 // pred_check_branch
        %320 = sbr.rel (%p318) target = $region36
      $region35: #{_lambda_.5} parent=31 // pred_region
        _
      $region36: #{_lambda_.5} parent=31 // pred_fallthru
        _
    $region32: #{_lambda_.5} parent=5 // pred_fallthru
      _
    %p321 = scmp.le.s32.totalorder 2, %s9
    // Predicated region
    $region37: #{_lambda_.5} parent=5 // pred_check
      %p322 = pneg %p321
    $region38: #{_lambda_.5} parent=5 // pred_check_branch
      %324 = sbr.rel (%p322) target = $region40
    $region39: #{_lambda_.5} parent=5 // pred_region
      %s325 = ssub.s32 %s9, 2
      // Predicated region
      $region41: #{_lambda_.5} parent=39 // pred_check
        %p326 = pneg %p132
      $region42: #{_lambda_.5} parent=39 // pred_check_branch
        %328 = sbr.rel (%p326) target = $region44
      $region43: #{_lambda_.5} parent=39 // pred_region
        %p329 = scmp.lt.s32.totalorder %s20, 1
        %s330 = scalar_select %p329, %s20, 1
        %p331 = scmp.lt.s32.totalorder %s21, 0
        %s332 = scalar_select %p331, %s21, 0
        %s333 = sadd.s32 %s332, %s330
        %s334 = smul.addr %s333, 8
        %s335 = scalar_lea.vmem %s3, %s334
      $region44: #{_lambda_.5} parent=39 // pred_fallthru
        _
    $region40: #{_lambda_.5} parent=5 // pred_fallthru
      _
  $region6: #{_lambda_.5} parent=0 // loop_footer
    %s13 = sadd.s32 1, %s9
  $region7: #{_lambda_.5} parent=0 // loop_footer_branch
    %8 = sbr.rel target = $region3
  $region8: #{_lambda_.5} parent=0 // loop_exit
    _

</llo_original>
